<compile_context>
chip_gen: v7x
topology: tpu7x:2x2x1
jax: 0.10.0
libtpu: 0.0.40
codegen_flags: <defaults>
</compile_context>

<pallas_src>
import jax
import jax.numpy as jnp
from jax.experimental import pallas as pl
from jax.experimental.pallas import tpu as pltpu

HID = 256  # fixed by the module definition


def _round_up(x, m):
    return (x + m - 1) // m * m


# ---------------------------------------------------------------------------
# Kernel: MLP (Linear -> ReLU -> Linear) on TB*S flattened rows, then max-pool
# over each sequence's S rows.  Grid iterates over batch tiles of TB sequences.
# ---------------------------------------------------------------------------
def _mlp_maxpool_kernel(x_ref, w1_ref, b1_ref, w2_ref, b2_ref, o_ref):
    rows, _ = x_ref.shape            # rows = TB * S (bf16 input)
    tb, hid = o_ref.shape
    s = rows // tb

    # (TB*S, D) @ (D, HID) -> f32, bias + ReLU on the VPU in f32.
    h = jnp.dot(x_ref[...], w1_ref[...], preferred_element_type=jnp.float32)
    h = jnp.maximum(h + b1_ref[...], 0.0)

    # (TB*S, HID) @ (HID, HID) -> f32 accumulate on the MXU.
    y = jnp.dot(h.astype(jnp.bfloat16), w2_ref[...],
                preferred_element_type=jnp.float32)

    # Max over the sequence axis; b2 folded in after the max (column-constant).
    o_ref[...] = jnp.max(y.reshape(tb, s, hid), axis=1) + b2_ref[...]


def mlp_maxpool(x, w1, b1, w2, b2, *, target_rows=256):
    """x: (N, S, D) -> (N, HID); Linear->ReLU->Linear then max over S."""
    N, S, D = x.shape

    # Batch tile: TB sequences per grid step so TB*S ~= target_rows MXU rows,
    # TB a multiple of 8 for a sublane-aligned output block.
    tb = _round_up(max(8, -(-target_rows // S)), 8)
    tb = min(tb, _round_up(N, 8))
    n_pad = _round_up(N, tb)
    if n_pad != N:
        x = jnp.pad(x, ((0, n_pad - N), (0, 0), (0, 0)))  # padded rows sliced off below
    grid = (n_pad // tb,)

    # bf16 matmul operands, f32 biases.
    x_flat = x.reshape(n_pad * S, D).astype(jnp.bfloat16)
    w1_b = w1.astype(jnp.bfloat16)
    w2_b = w2.astype(jnp.bfloat16)
    b1_f = b1.reshape(1, HID).astype(jnp.float32)
    b2_f = b2.reshape(1, HID).astype(jnp.float32)

    flops = 2 * n_pad * S * (D * HID + HID * HID)
    bytes_accessed = (x_flat.size * 2 + w1_b.size * 2 + w2_b.size * 2
                      + (b1_f.size + b2_f.size) * 4 + n_pad * HID * 4)

    out = pl.pallas_call(
        _mlp_maxpool_kernel,
        out_shape=jax.ShapeDtypeStruct((n_pad, HID), jnp.float32),
        grid=grid,
        in_specs=[
            pl.BlockSpec((tb * S, D), lambda n: (n, 0)),    # one batch tile of rows
            pl.BlockSpec((D, HID), lambda n: (0, 0)),       # W1 resident
            pl.BlockSpec((1, HID), lambda n: (0, 0)),       # b1 resident
            pl.BlockSpec((HID, HID), lambda n: (0, 0)),     # W2 resident
            pl.BlockSpec((1, HID), lambda n: (0, 0)),       # b2 resident
        ],
        out_specs=pl.BlockSpec((tb, HID), lambda n: (n, 0)),
        compiler_params=pltpu.CompilerParams(
            dimension_semantics=("parallel",)),             # megacore-shardable
        cost_estimate=pl.CostEstimate(
            flops=flops, transcendentals=0, bytes_accessed=bytes_accessed),
    )(x_flat, w1_b, b1_f, w2_b, b2_f)

    return out[:N]


# ---------------------------------------------------------------------------
# Forward pass equivalent to ExampleNet.forward
# ---------------------------------------------------------------------------
def example_net_forward(params, context, context_lens, options, option_lens):
    # context_lens / option_lens are accepted but unused — exactly like the
    # PyTorch module, which ignores them.
    w1, b1, w2, b2 = params
    B, Lc, D = context.shape
    _, O, Lo, _ = options.shape

    opts_flat = options.reshape(B * O, Lo, D)
    if Lc == Lo:
        # One launch for context + all options: amortizes weight DMA and gives
        # the batch-tiled grid more steps to pipeline / split across TCs.
        emb = mlp_maxpool(jnp.concatenate([context, opts_flat], axis=0),
                          w1, b1, w2, b2)
        ctx_emb = emb[:B]                               # (B, HID)
        opt_emb = emb[B:].reshape(B, O, HID)            # (B, O, HID)
    else:
        ctx_emb = mlp_maxpool(context, w1, b1, w2, b2)
        opt_emb = mlp_maxpool(opts_flat, w1, b1, w2, b2).reshape(B, O, HID)

    # Squared-L2 logits in plain XLA: a (B, O) result is far too small to be
    # worth a pallas_call (launch + masked-store overhead only).
    d = opt_emb - ctx_emb[:, None, :]
    return jnp.sum(d * d, axis=-1)                      # (B, O)


# Pure-JAX reference (for correctness check only).
def ref_forward(params, context, options, matmul_dtype=jnp.float32):
    w1, b1, w2, b2 = params
    b1v = b1.reshape(-1)
    b2v = b2.reshape(-1)

    def mlp(x):
        h = jnp.dot(x.astype(matmul_dtype), w1.astype(matmul_dtype),
                    preferred_element_type=jnp.float32) + b1v
        h = jnp.maximum(h, 0.0)
        return jnp.dot(h.astype(matmul_dtype), w2.astype(matmul_dtype),
                       preferred_element_type=jnp.float32) + b2v

    c = jnp.max(mlp(context), axis=1)          # (B, HID)
    o = jnp.max(mlp(options), axis=2)          # (B, O, HID)
    return jnp.sum((c[:, None, :] - o) ** 2, axis=-1)


if __name__ == "__main__":
    B, O, Lc, Lo, D = 2, 3, 8, 8, 32

    key = jax.random.PRNGKey(0)
    k1, k2, k3, k4, kc, ko = jax.random.split(key, 6)

    # Deterministic parameter init (PyTorch Linear-style uniform bounds).
    bound1 = 1.0 / jnp.sqrt(jnp.float32(D))
    w1 = jax.random.uniform(k1, (D, HID), jnp.float32, -bound1, bound1)
    b1 = jax.random.uniform(k2, (1, HID), jnp.float32, -bound1, bound1)
    bound2 = 1.0 / jnp.sqrt(jnp.float32(HID))
    w2 = jax.random.uniform(k3, (HID, HID), jnp.float32, -bound2, bound2)
    b2 = jax.random.uniform(k4, (1, HID), jnp.float32, -bound2, bound2)
    params = (w1, b1, w2, b2)

    context = jax.random.normal(kc, (B, Lc, D), jnp.float32)
    options = jax.random.normal(ko, (B, O, Lo, D), jnp.float32)
    context_lens = jnp.full((B,), Lc, jnp.int32)     # unused by forward
    option_lens = jnp.full((B, O), Lo, jnp.int32)    # unused by forward

    fwd = jax.jit(example_net_forward)
    logits = fwd(params, context, context_lens, options, option_lens)
    logits = jax.block_until_ready(logits)
    assert logits.shape == (B, O)

    # Tight check against a reference using the same bf16-matmul / f32-accumulate
    # numerics as the kernel.
    ref_bf16 = ref_forward(params, context, options, matmul_dtype=jnp.bfloat16)
    assert jnp.allclose(logits, ref_bf16, rtol=2e-3, atol=2e-3), (logits, ref_bf16)

    # Loose sanity check against the pure-f32 module semantics (bf16 matmul noise).
    ref_f32 = ref_forward(params, context, options, matmul_dtype=jnp.float32)
    assert jnp.allclose(logits, ref_f32, rtol=1e-1, atol=5e-1), (logits, ref_f32)

    print("KERNEL_OK")
</pallas_src>

<mosaic_0001>
module attributes {stable_mosaic.version = 11 : i64} {
  func.func @_mlp_maxpool_kernel(%arg0: i32, %arg1: memref<64x32xbf16, #tpu.memory_space<vmem>>, %arg2: memref<32x256xbf16, #tpu.memory_space<vmem>>, %arg3: memref<1x256xf32, #tpu.memory_space<vmem>>, %arg4: memref<256x256xbf16, #tpu.memory_space<vmem>>, %arg5: memref<1x256xf32, #tpu.memory_space<vmem>>, %arg6: memref<8x256xf32, #tpu.memory_space<vmem>>) attributes {dimension_semantics = [#tpu.dimension_semantics<parallel>], iteration_bounds = array<i64: 1>, scalar_prefetch = 0 : i64, scratch_operands = 0 : i64, tpu.core_type = #tpu.core_type<tc>, window_params = [{transform_indices = @transform_0, window_bounds = array<i64: 64, 32>}, {pipeline_mode = #tpu.pipeline_mode<synchronous>, transform_indices = @transform_1, window_bounds = array<i64: 32, 256>}, {pipeline_mode = #tpu.pipeline_mode<synchronous>, transform_indices = @transform_2, window_bounds = array<i64: 1, 256>}, {pipeline_mode = #tpu.pipeline_mode<synchronous>, transform_indices = @transform_3, window_bounds = array<i64: 256, 256>}, {pipeline_mode = #tpu.pipeline_mode<synchronous>, transform_indices = @transform_4, window_bounds = array<i64: 1, 256>}, {transform_indices = @transform_5, window_bounds = array<i64: 8, 256>}]} {
    %c0 = arith.constant 0 : index
    %c0_0 = arith.constant 0 : index
    %0 = vector.load %arg1[%c0, %c0_0] : memref<64x32xbf16, #tpu.memory_space<vmem>>, vector<64x32xbf16>
    %c0_1 = arith.constant 0 : index
    %c0_2 = arith.constant 0 : index
    %1 = vector.load %arg2[%c0_1, %c0_2] : memref<32x256xbf16, #tpu.memory_space<vmem>>, vector<32x256xbf16>
    %cst = arith.constant dense<0.000000e+00> : vector<64x256xf32>
    %2 = tpu.matmul %0, %1, %cst {dimension_numbers = #tpu.dot_dimension_numbers<[1], [0], [0], [1], [0, 0, 1, 1], [], []>} : vector<64x32xbf16>, vector<32x256xbf16>, vector<64x256xf32> -> vector<64x256xf32>
    %c0_3 = arith.constant 0 : index
    %c0_4 = arith.constant 0 : index
    %3 = vector.load %arg3[%c0_3, %c0_4] : memref<1x256xf32, #tpu.memory_space<vmem>>, vector<1x256xf32>
    %4 = vector.broadcast %3 : vector<1x256xf32> to vector<64x256xf32>
    %5 = arith.addf %2, %4 : vector<64x256xf32>
    %cst_5 = arith.constant 0.000000e+00 : f32
    %6 = vector.broadcast %cst_5 : f32 to vector<64x256xf32>
    %7 = arith.maximumf %5, %6 : vector<64x256xf32>
    %8 = arith.truncf %7 : vector<64x256xf32> to vector<64x256xbf16>
    %c0_6 = arith.constant 0 : index
    %c0_7 = arith.constant 0 : index
    %9 = vector.load %arg4[%c0_6, %c0_7] : memref<256x256xbf16, #tpu.memory_space<vmem>>, vector<256x256xbf16>
    %cst_8 = arith.constant dense<0.000000e+00> : vector<64x256xf32>
    %10 = tpu.matmul %8, %9, %cst_8 {dimension_numbers = #tpu.dot_dimension_numbers<[1], [0], [0], [1], [0, 0, 1, 1], [], []>} : vector<64x256xbf16>, vector<256x256xbf16>, vector<64x256xf32> -> vector<64x256xf32>
    %11 = vector.shape_cast %10 : vector<64x256xf32> to vector<8x8x256xf32>
    %cst_9 = arith.constant dense<0xFF800000> : vector<8x256xf32>
    %12 = vector.multi_reduction <maximumf>, %11, %cst_9 [1] : vector<8x8x256xf32> to vector<8x256xf32>
    %c0_10 = arith.constant 0 : index
    %c0_11 = arith.constant 0 : index
    %13 = vector.load %arg5[%c0_10, %c0_11] : memref<1x256xf32, #tpu.memory_space<vmem>>, vector<1x256xf32>
    %14 = vector.broadcast %13 : vector<1x256xf32> to vector<8x256xf32>
    %15 = arith.addf %12, %14 : vector<8x256xf32>
    %c0_12 = arith.constant 0 : index
    %c0_13 = arith.constant 0 : index
    %16 = vector.load %arg6[%c0_12, %c0_13] : memref<8x256xf32, #tpu.memory_space<vmem>>, vector<8x256xf32>
    tpu.vector_store %arg6[%c0_12, %c0_13], %15 {strides = array<i32>} : memref<8x256xf32, #tpu.memory_space<vmem>>, vector<8x256xf32>,
    return
  }
  func.func @transform_0(%arg0: i32) -> (i32, i32) {
    %c0_i32 = arith.constant 0 : i32
    %c0_i32_0 = arith.constant 0 : i32
    return %arg0, %c0_i32 : i32, i32
  }
  func.func @transform_1(%arg0: i32) -> (i32, i32) {
    %c0_i32 = arith.constant 0 : i32
    %c0_i32_0 = arith.constant 0 : i32
    %c0_i32_1 = arith.constant 0 : i32
    return %c0_i32, %c0_i32_0 : i32, i32
  }
  func.func @transform_2(%arg0: i32) -> (i32, i32) {
    %c0_i32 = arith.constant 0 : i32
    %c0_i32_0 = arith.constant 0 : i32
    %c0_i32_1 = arith.constant 0 : i32
    return %c0_i32, %c0_i32_0 : i32, i32
  }
  func.func @transform_3(%arg0: i32) -> (i32, i32) {
    %c0_i32 = arith.constant 0 : i32
    %c0_i32_0 = arith.constant 0 : i32
    %c0_i32_1 = arith.constant 0 : i32
    return %c0_i32, %c0_i32_0 : i32, i32
  }
  func.func @transform_4(%arg0: i32) -> (i32, i32) {
    %c0_i32 = arith.constant 0 : i32
    %c0_i32_0 = arith.constant 0 : i32
    %c0_i32_1 = arith.constant 0 : i32
    return %c0_i32, %c0_i32_0 : i32, i32
  }
  func.func @transform_5(%arg0: i32) -> (i32, i32) {
    %c0_i32 = arith.constant 0 : i32
    %c0_i32_0 = arith.constant 0 : i32
    return %arg0, %c0_i32 : i32, i32
  }
}

</mosaic_0001>

<llo_original>
// kernel: example_net_forward.1
$region0: #{example_net_forward.1}
  #allocation0 [shape = 'u32[]', space=smem, size = 0x4, offset = 0x4, fixed_abs, tag = 'smem constant byte address 0x4 - core index']
  #allocation1 [shape = 'u32[144,128]{1,0:T(1,128)}', space=vmem, size = 0x12000, scoped, tag = 'internal scratch']
  %s0 = inlined_call_operand.vmem [shape: bf16[64,32], index: 0, kind: input, shape index: {}]
  %s1 = inlined_call_operand.vmem [shape: bf16[32,256], index: 1, kind: input, shape index: {}]
  %s2 = inlined_call_operand.vmem [shape: f32[1,256], index: 2, kind: input, shape index: {}]
  %s3 = inlined_call_operand.vmem [shape: bf16[256,256], index: 3, kind: input, shape index: {}]
  %s4 = inlined_call_operand.vmem [shape: f32[1,256], index: 4, kind: input, shape index: {}]
  %s5 = inlined_call_operand.vmem [shape: f32[8,256], index: 5, kind: output, shape index: {}]
  %s6 = sld [smem:[#allocation0]]
  $region30: #{example_net_forward.1} parent=0
    _
  %s8 = ssub.s32 1, %s6
  %s9 = scalar_select 0, %s8, %s6
  // Predicated region
  $region2: #{example_net_forward.1} parent=0 // pred_check
    _
  $region3: #{example_net_forward.1} parent=0 // pred_check_branch
    %11 = sbr.rel (0) target = $region5
  $region4: #{example_net_forward.1} parent=0 // pred_region
    _
  $region5: #{example_net_forward.1} parent=0 // pred_fallthru
    _
  // Predicated region
  $region6: #{example_net_forward.1} parent=0 // pred_check
    _
  $region7: #{example_net_forward.1} parent=0 // pred_check_branch
    %13 = sbr.rel (0) target = $region9
  $region8: #{example_net_forward.1} parent=0 // pred_region
    _
  $region9: #{example_net_forward.1} parent=0 // pred_fallthru
    _
  // Predicated region
  $region10: #{example_net_forward.1} parent=0 // pred_check
    _
  $region11: #{example_net_forward.1} parent=0 // pred_check_branch
    %15 = sbr.rel (0) target = $region13
  $region12: #{example_net_forward.1} parent=0 // pred_region
    _
  $region13: #{example_net_forward.1} parent=0 // pred_fallthru
    _
  // Predicated region
  $region14: #{example_net_forward.1} parent=0 // pred_check
    _
  $region15: #{example_net_forward.1} parent=0 // pred_check_branch
    %17 = sbr.rel (0) target = $region17
  $region16: #{example_net_forward.1} parent=0 // pred_region
    _
  $region17: #{example_net_forward.1} parent=0 // pred_fallthru
    _
  // Predicated region
  $region18: #{example_net_forward.1} parent=0 // pred_check
    _
  $region19: #{example_net_forward.1} parent=0 // pred_check_branch
    %19 = sbr.rel (0) target = $region21
  $region20: #{example_net_forward.1} parent=0 // pred_region
    _
  $region21: #{example_net_forward.1} parent=0 // pred_fallthru
    _
  %v21 = vld [vmem:[%s0] sm:$0xf]
  %v22 = vld [vmem:[%s0 + $0x4] sm:$0xf]
  %v23 = vld [vmem:[%s0 + $0x8] sm:$0xf]
  %v24 = vld [vmem:[%s0 + $0xc] sm:$0xf]
  %v25 = vld [vmem:[%s0 + $0x10] sm:$0xf]
  %v26 = vld [vmem:[%s0 + $0x14] sm:$0xf]
  %v27 = vld [vmem:[%s0 + $0x18] sm:$0xf]
  %v28 = vld [vmem:[%s0 + $0x1c] sm:$0xf]
  %v29 = vld [vmem:[%s1] sm:$0xff]
  %v30 = vld [vmem:[%s1 + $0x8] sm:$0xff]
  %v31 = vld [vmem:[%s1 + $0x10] sm:$0xff]
  %v32 = vld [vmem:[%s1 + $0x18] sm:$0xff]
  %v33 = vld [vmem:[%s2] sm:$0x3]
  %v35 = vlaneseq
  %v36 = vshrl.u32 %v35, 7
  %v37 = vsub.s32 0, %v36
  %v38 = vrot.slane %v33, %v37
  %v39 = vlaneseq
  %v40 = vshrl.u32 %v39, 7
  %v41 = vsub.s32 1, %v40
  %v42 = vrot.slane %v33, %v41
  %v53 = vunpack.c.l.b16 %v21
  %v54 = vunpack.c.l.b16 %v22
  %v55 = vunpack.c.l.b16 %v23
  %v56 = vunpack.c.l.b16 %v24
  %v57 = vunpack.c.l.b16 %v25
  %v58 = vunpack.c.l.b16 %v26
  %v59 = vunpack.c.l.b16 %v27
  %v60 = vunpack.c.l.b16 %v28
  %v61 = vpack.c.b16 %v54, %v53
  %v62 = vpack.c.b16 %v56, %v55
  %v63 = vpack.c.b16 %v58, %v57
  %v64 = vpack.c.b16 %v60, %v59
  %v69 = vunpack.c.l.b16 %v29
  %v70 = vunpack.c.h.b16 %v29
  %v71 = vunpack.c.l.b16 %v30
  %v72 = vunpack.c.h.b16 %v30
  %v73 = vunpack.c.l.b16 %v31
  %v74 = vunpack.c.h.b16 %v31
  %v75 = vunpack.c.l.b16 %v32
  %v76 = vunpack.c.h.b16 %v32
  %v77 = vpack.c.b16 %v71, %v69
  %v78 = vpack.c.b16 %v72, %v70
  %v79 = vpack.c.b16 %v75, %v73
  %v80 = vpack.c.b16 %v76, %v74
  %vm85 = vcmask 261120
  %v87 = vsel %vm85, %v61, 0
  %v90 = vsel %vm85, %v62, 0
  %v93 = vsel %vm85, %v63, 0
  %v96 = vsel %vm85, %v64, 0
  %98 = vmatprep.subr.bf16.mxu0 %v78
  %99 = vmatpush1.bf16.msra.mxu0 %v77
  %100 = vmatprep.subr.bf16.mxu0 %v80
  %101 = vmatpush1.bf16.msra.mxu0 %v79
  %102 = vmatprep.subr.bf16.mxu0 0
  %103 = vmatpush1.bf16.msra.mxu0 0
  %104 = vmatprep.subr.bf16.mxu0 0
  %105 = vmatpush1.bf16.msra.mxu0 0
  %106 = vmatprep.subr.bf16.mxu0 0
  %107 = vmatpush1.bf16.msra.mxu0 0
  %108 = vmatprep.subr.bf16.mxu0 0
  %109 = vmatpush1.bf16.msra.mxu0 0
  %110 = vmatprep.subr.bf16.mxu0 0
  %111 = vmatpush1.bf16.msra.mxu0 0
  %112 = vmatprep.subr.bf16.mxu0 0
  %113 = vmatpush1.bf16.msra.mxu0 0
  %114 = vmatprep.subr.bf16.mxu0 0
  %115 = vmatpush1.bf16.msra.mxu0 0
  %116 = vmatprep.subr.bf16.mxu0 0
  %117 = vmatpush1.bf16.msra.mxu0 0
  %118 = vmatprep.subr.bf16.mxu0 0
  %119 = vmatpush1.bf16.msra.mxu0 0
  %120 = vmatprep.subr.bf16.mxu0 0
  %121 = vmatpush1.bf16.msra.mxu0 0
  %122 = vmatprep.subr.bf16.mxu0 0
  %123 = vmatpush1.bf16.msra.mxu0 0
  %124 = vmatprep.subr.bf16.mxu0 0
  %125 = vmatpush1.bf16.msra.mxu0 0
  %126 = vmatprep.subr.bf16.mxu0 0
  %127 = vmatpush1.bf16.msra.mxu0 0
  %128 = vmatprep.subr.bf16.mxu0 0
  %129 = vmatpush1.bf16.msra.mxu0 0
  %130 = vmatprep.mubr.bf16.mxu0 0
  %131 = vmatmul.mubr.bf16.gmra.mrb[0].mxu0 %v87
  %v132 = vpop.f32.mrb[0].mxu0
  %v133 = vadd.f32 %v38, %v132
  %v134 = vpop.f32.mrb[0].mxu0
  %v135 = vadd.f32 %v42, %v134
  %v136 = vpop.f32.mrb[0].mxu0
  %v137 = vadd.f32 %v38, %v136
  %v138 = vpop.f32.mrb[0].mxu0
  %v139 = vadd.f32 %v42, %v138
  %140 = vmatprep.mubr.bf16.mxu0 0
  %141 = vmatmul.mubr.bf16.gmra.mrb[0].mxu0 %v90
  %v142 = vpop.f32.mrb[0].mxu0
  %v143 = vadd.f32 %v38, %v142
  %v144 = vpop.f32.mrb[0].mxu0
  %v145 = vadd.f32 %v42, %v144
  %v146 = vpop.f32.mrb[0].mxu0
  %v147 = vadd.f32 %v38, %v146
  %v148 = vpop.f32.mrb[0].mxu0
  %v149 = vadd.f32 %v42, %v148
  %150 = vmatprep.mubr.bf16.mxu0 0
  %151 = vmatmul.mubr.bf16.gmra.mrb[0].mxu0 %v93
  %v152 = vpop.f32.mrb[0].mxu0
  %v153 = vadd.f32 %v38, %v152
  %v154 = vpop.f32.mrb[0].mxu0
  %v155 = vadd.f32 %v42, %v154
  %v156 = vpop.f32.mrb[0].mxu0
  %v157 = vadd.f32 %v38, %v156
  %v158 = vpop.f32.mrb[0].mxu0
  %v159 = vadd.f32 %v42, %v158
  %160 = vmatprep.mubr.bf16.mxu0 0
  %161 = vmatmul.mubr.bf16.gmra.mrb[0].mxu0 %v96
  %v162 = vpop.f32.mrb[0].mxu0
  %v163 = vadd.f32 %v38, %v162
  %v164 = vpop.f32.mrb[0].mxu0
  %v165 = vadd.f32 %v42, %v164
  %v166 = vpop.f32.mrb[0].mxu0
  %v167 = vadd.f32 %v38, %v166
  %v168 = vpop.f32.mrb[0].mxu0
  %v169 = vadd.f32 %v42, %v168
  %170 = vdwg.mxu0
  %v171 = vmax.f32 %v133, 0.0
  %v172 = vmax.f32 %v135, 0.0
  %v173 = vmax.f32 %v137, 0.0
  %v174 = vmax.f32 %v139, 0.0
  %v175 = vmax.f32 %v143, 0.0
  %v176 = vmax.f32 %v145, 0.0
  %v177 = vmax.f32 %v147, 0.0
  %v178 = vmax.f32 %v149, 0.0
  %v179 = vmax.f32 %v153, 0.0
  %v180 = vmax.f32 %v155, 0.0
  %v181 = vmax.f32 %v157, 0.0
  %v182 = vmax.f32 %v159, 0.0
  %v183 = vmax.f32 %v163, 0.0
  %v184 = vmax.f32 %v165, 0.0
  %v185 = vmax.f32 %v167, 0.0
  %v186 = vmax.f32 %v169, 0.0
  %v187 = vpack.c.bf16 %v173, %v171
  %v188 = vpack.c.bf16 %v174, %v172
  %v189 = vpack.c.bf16 %v177, %v175
  %v190 = vpack.c.bf16 %v178, %v176
  %v191 = vpack.c.bf16 %v181, %v179
  %v192 = vpack.c.bf16 %v182, %v180
  %v193 = vpack.c.bf16 %v185, %v183
  %v194 = vpack.c.bf16 %v186, %v184
  %v195 = vld [vmem:[%s3] sm:$0xff]
  %v196 = vld [vmem:[%s3 + $0x8] sm:$0xff]
  %v197 = vld [vmem:[%s3 + $0x10] sm:$0xff]
  %v198 = vld [vmem:[%s3 + $0x18] sm:$0xff]
  %v199 = vld [vmem:[%s3 + $0x20] sm:$0xff]
  %v200 = vld [vmem:[%s3 + $0x28] sm:$0xff]
  %v201 = vld [vmem:[%s3 + $0x30] sm:$0xff]
  %v202 = vld [vmem:[%s3 + $0x38] sm:$0xff]
  %v203 = vld [vmem:[%s3 + $0x40] sm:$0xff]
  %v204 = vld [vmem:[%s3 + $0x48] sm:$0xff]
  %v205 = vld [vmem:[%s3 + $0x50] sm:$0xff]
  %v206 = vld [vmem:[%s3 + $0x58] sm:$0xff]
  %v207 = vld [vmem:[%s3 + $0x60] sm:$0xff]
  %v208 = vld [vmem:[%s3 + $0x68] sm:$0xff]
  %v209 = vld [vmem:[%s3 + $0x70] sm:$0xff]
  %v210 = vld [vmem:[%s3 + $0x78] sm:$0xff]
  %v211 = vld [vmem:[%s3 + $0x80] sm:$0xff]
  %v212 = vld [vmem:[%s3 + $0x88] sm:$0xff]
  %v213 = vld [vmem:[%s3 + $0x90] sm:$0xff]
  %v214 = vld [vmem:[%s3 + $0x98] sm:$0xff]
  %v215 = vld [vmem:[%s3 + $0xa0] sm:$0xff]
  %v216 = vld [vmem:[%s3 + $0xa8] sm:$0xff]
  %v217 = vld [vmem:[%s3 + $0xb0] sm:$0xff]
  %v218 = vld [vmem:[%s3 + $0xb8] sm:$0xff]
  %v219 = vld [vmem:[%s3 + $0xc0] sm:$0xff]
  %v220 = vld [vmem:[%s3 + $0xc8] sm:$0xff]
  %v221 = vld [vmem:[%s3 + $0xd0] sm:$0xff]
  %v222 = vld [vmem:[%s3 + $0xd8] sm:$0xff]
  %v223 = vld [vmem:[%s3 + $0xe0] sm:$0xff]
  %v224 = vld [vmem:[%s3 + $0xe8] sm:$0xff]
  %v225 = vld [vmem:[%s3 + $0xf0] sm:$0xff]
  %v226 = vld [vmem:[%s3 + $0xf8] sm:$0xff]
  %v259 = vunpack.c.l.b16 %v195
  %v260 = vunpack.c.h.b16 %v195
  %v261 = vunpack.c.l.b16 %v196
  %v262 = vunpack.c.h.b16 %v196
  %v263 = vunpack.c.l.b16 %v197
  %v264 = vunpack.c.h.b16 %v197
  %v265 = vunpack.c.l.b16 %v198
  %v266 = vunpack.c.h.b16 %v198
  %v267 = vunpack.c.l.b16 %v199
  %v268 = vunpack.c.h.b16 %v199
  %v269 = vunpack.c.l.b16 %v200
  %v270 = vunpack.c.h.b16 %v200
  %v271 = vunpack.c.l.b16 %v201
  %v272 = vunpack.c.h.b16 %v201
  %v273 = vunpack.c.l.b16 %v202
  %v274 = vunpack.c.h.b16 %v202
  %v275 = vunpack.c.l.b16 %v203
  %v276 = vunpack.c.h.b16 %v203
  %v277 = vunpack.c.l.b16 %v204
  %v278 = vunpack.c.h.b16 %v204
  %v279 = vunpack.c.l.b16 %v205
  %v280 = vunpack.c.h.b16 %v205
  %v281 = vunpack.c.l.b16 %v206
  %v282 = vunpack.c.h.b16 %v206
  %v283 = vunpack.c.l.b16 %v207
  %v284 = vunpack.c.h.b16 %v207
  %v285 = vunpack.c.l.b16 %v208
  %v286 = vunpack.c.h.b16 %v208
  %v287 = vunpack.c.l.b16 %v209
  %v288 = vunpack.c.h.b16 %v209
  %v289 = vunpack.c.l.b16 %v210
  %v290 = vunpack.c.h.b16 %v210
  %v291 = vunpack.c.l.b16 %v211
  %v292 = vunpack.c.h.b16 %v211
  %v293 = vunpack.c.l.b16 %v212
  %v294 = vunpack.c.h.b16 %v212
  %v295 = vunpack.c.l.b16 %v213
  %v296 = vunpack.c.h.b16 %v213
  %v297 = vunpack.c.l.b16 %v214
  %v298 = vunpack.c.h.b16 %v214
  %v299 = vunpack.c.l.b16 %v215
  %v300 = vunpack.c.h.b16 %v215
  %v301 = vunpack.c.l.b16 %v216
  %v302 = vunpack.c.h.b16 %v216
  %v303 = vunpack.c.l.b16 %v217
  %v304 = vunpack.c.h.b16 %v217
  %v305 = vunpack.c.l.b16 %v218
  %v306 = vunpack.c.h.b16 %v218
  %v307 = vunpack.c.l.b16 %v219
  %v308 = vunpack.c.h.b16 %v219
  %v309 = vunpack.c.l.b16 %v220
  %v310 = vunpack.c.h.b16 %v220
  %v311 = vunpack.c.l.b16 %v221
  %v312 = vunpack.c.h.b16 %v221
  %v313 = vunpack.c.l.b16 %v222
  %v314 = vunpack.c.h.b16 %v222
  %v315 = vunpack.c.l.b16 %v223
  %v316 = vunpack.c.h.b16 %v223
  %v317 = vunpack.c.l.b16 %v224
  %v318 = vunpack.c.h.b16 %v224
  %v319 = vunpack.c.l.b16 %v225
  %v320 = vunpack.c.h.b16 %v225
  %v321 = vunpack.c.l.b16 %v226
  %v322 = vunpack.c.h.b16 %v226
  %v323 = vpack.c.b16 %v261, %v259
  %v324 = vpack.c.b16 %v262, %v260
  %v325 = vpack.c.b16 %v265, %v263
  %v326 = vpack.c.b16 %v266, %v264
  %v327 = vpack.c.b16 %v269, %v267
  %v328 = vpack.c.b16 %v270, %v268
  %v329 = vpack.c.b16 %v273, %v271
  %v330 = vpack.c.b16 %v274, %v272
  %v331 = vpack.c.b16 %v277, %v275
  %v332 = vpack.c.b16 %v278, %v276
  %v333 = vpack.c.b16 %v281, %v279
  %v334 = vpack.c.b16 %v282, %v280
  %v335 = vpack.c.b16 %v285, %v283
  %v336 = vpack.c.b16 %v286, %v284
  %v337 = vpack.c.b16 %v289, %v287
  %v338 = vpack.c.b16 %v290, %v288
  %v339 = vpack.c.b16 %v293, %v291
  %v340 = vpack.c.b16 %v294, %v292
  %v341 = vpack.c.b16 %v297, %v295
  %v342 = vpack.c.b16 %v298, %v296
  %v343 = vpack.c.b16 %v301, %v299
  %v344 = vpack.c.b16 %v302, %v300
  %v345 = vpack.c.b16 %v305, %v303
  %v346 = vpack.c.b16 %v306, %v304
  %v347 = vpack.c.b16 %v309, %v307
  %v348 = vpack.c.b16 %v310, %v308
  %v349 = vpack.c.b16 %v313, %v311
  %v350 = vpack.c.b16 %v314, %v312
  %v351 = vpack.c.b16 %v317, %v315
  %v352 = vpack.c.b16 %v318, %v316
  %v353 = vpack.c.b16 %v321, %v319
  %v354 = vpack.c.b16 %v322, %v320
  %387 = vmatprep.subr.bf16.mxu0 %v324
  %388 = vmatpush1.bf16.msra.mxu0 %v323
  %389 = vmatprep.subr.bf16.mxu0 %v326
  %390 = vmatpush1.bf16.msra.mxu0 %v325
  %391 = vmatprep.subr.bf16.mxu0 %v328
  %392 = vmatpush1.bf16.msra.mxu0 %v327
  %393 = vmatprep.subr.bf16.mxu0 %v330
  %394 = vmatpush1.bf16.msra.mxu0 %v329
  %395 = vmatprep.subr.bf16.mxu0 %v332
  %396 = vmatpush1.bf16.msra.mxu0 %v331
  %397 = vmatprep.subr.bf16.mxu0 %v334
  %398 = vmatpush1.bf16.msra.mxu0 %v333
  %399 = vmatprep.subr.bf16.mxu0 %v336
  %400 = vmatpush1.bf16.msra.mxu0 %v335
  %401 = vmatprep.subr.bf16.mxu0 %v338
  %402 = vmatpush1.bf16.msra.mxu0 %v337
  %403 = vmatprep.subr.bf16.mxu0 %v340
  %404 = vmatpush1.bf16.msra.mxu0 %v339
  %405 = vmatprep.subr.bf16.mxu0 %v342
  %406 = vmatpush1.bf16.msra.mxu0 %v341
  %407 = vmatprep.subr.bf16.mxu0 %v344
  %408 = vmatpush1.bf16.msra.mxu0 %v343
  %409 = vmatprep.subr.bf16.mxu0 %v346
  %410 = vmatpush1.bf16.msra.mxu0 %v345
  %411 = vmatprep.subr.bf16.mxu0 %v348
  %412 = vmatpush1.bf16.msra.mxu0 %v347
  %413 = vmatprep.subr.bf16.mxu0 %v350
  %414 = vmatpush1.bf16.msra.mxu0 %v349
  %415 = vmatprep.subr.bf16.mxu0 %v352
  %416 = vmatpush1.bf16.msra.mxu0 %v351
  %417 = vmatprep.subr.bf16.mxu0 %v354
  %418 = vmatpush1.bf16.msra.mxu0 %v353
  %419 = vmatprep.mubr.bf16.mxu0 %v188
  %420 = vmatmul.mubr.bf16.gmra.mrb[0].mxu0 %v187
  %v421 = vpop.f32.mrb[0].mxu0
  %v422 = vadd.f32 0.0, %v421
  %v423 = vpop.f32.mrb[0].mxu0
  %v424 = vadd.f32 0.0, %v423
  %v425 = vpop.f32.mrb[0].mxu0
  %v426 = vadd.f32 0.0, %v425
  %v427 = vpop.f32.mrb[0].mxu0
  %v428 = vadd.f32 0.0, %v427
  %429 = vmatprep.mubr.bf16.mxu0 %v190
  %430 = vmatmul.mubr.bf16.gmra.mrb[0].mxu0 %v189
  %v431 = vpop.f32.mrb[0].mxu0
  %v432 = vadd.f32 0.0, %v431
  %v433 = vpop.f32.mrb[0].mxu0
  %v434 = vadd.f32 0.0, %v433
  %v435 = vpop.f32.mrb[0].mxu0
  %v436 = vadd.f32 0.0, %v435
  %v437 = vpop.f32.mrb[0].mxu0
  %v438 = vadd.f32 0.0, %v437
  %439 = vmatprep.mubr.bf16.mxu0 %v192
  %440 = vmatmul.mubr.bf16.gmra.mrb[0].mxu0 %v191
  %v441 = vpop.f32.mrb[0].mxu0
  %v442 = vadd.f32 0.0, %v441
  %v443 = vpop.f32.mrb[0].mxu0
  %v444 = vadd.f32 0.0, %v443
  %v445 = vpop.f32.mrb[0].mxu0
  %v446 = vadd.f32 0.0, %v445
  %v447 = vpop.f32.mrb[0].mxu0
  %v448 = vadd.f32 0.0, %v447
  %449 = vmatprep.mubr.bf16.mxu0 %v194
  %450 = vmatmul.mubr.bf16.gmra.mrb[0].mxu0 %v193
  %v451 = vpop.f32.mrb[0].mxu0
  %v452 = vadd.f32 0.0, %v451
  %v453 = vpop.f32.mrb[0].mxu0
  %v454 = vadd.f32 0.0, %v453
  %v455 = vpop.f32.mrb[0].mxu0
  %v456 = vadd.f32 0.0, %v455
  %v457 = vpop.f32.mrb[0].mxu0
  %v458 = vadd.f32 0.0, %v457
  %459 = vdwg.mxu0
  %v460 = vrot.slane %v422, 4
  %v461 = vmax.f32 %v422, %v460
  %v462 = vrot.slane %v461, 2
  %v463 = vmax.f32 %v461, %v462
  %v464 = vrot.slane %v463, 1
  %v465 = vmax.f32 %v463, %v464
  %v466 = vrot.slane %v424, 4
  %v467 = vmax.f32 %v424, %v466
  %v468 = vrot.slane %v467, 2
  %v469 = vmax.f32 %v467, %v468
  %v470 = vrot.slane %v469, 1
  %v471 = vmax.f32 %v469, %v470
  %v472 = vrot.slane %v426, 4
  %v473 = vmax.f32 %v426, %v472
  %v474 = vrot.slane %v473, 2
  %v475 = vmax.f32 %v473, %v474
  %v476 = vrot.slane %v475, 1
  %v477 = vmax.f32 %v475, %v476
  %v478 = vrot.slane %v428, 4
  %v479 = vmax.f32 %v428, %v478
  %v480 = vrot.slane %v479, 2
  %v481 = vmax.f32 %v479, %v480
  %v482 = vrot.slane %v481, 1
  %v483 = vmax.f32 %v481, %v482
  %v484 = vrot.slane %v432, 4
  %v485 = vmax.f32 %v432, %v484
  %v486 = vrot.slane %v485, 2
  %v487 = vmax.f32 %v485, %v486
  %v488 = vrot.slane %v487, 1
  %v489 = vmax.f32 %v487, %v488
  %v490 = vrot.slane %v434, 4
  %v491 = vmax.f32 %v434, %v490
  %v492 = vrot.slane %v491, 2
  %v493 = vmax.f32 %v491, %v492
  %v494 = vrot.slane %v493, 1
  %v495 = vmax.f32 %v493, %v494
  %v496 = vrot.slane %v436, 4
  %v497 = vmax.f32 %v436, %v496
  %v498 = vrot.slane %v497, 2
  %v499 = vmax.f32 %v497, %v498
  %v500 = vrot.slane %v499, 1
  %v501 = vmax.f32 %v499, %v500
  %v502 = vrot.slane %v438, 4
  %v503 = vmax.f32 %v438, %v502
  %v504 = vrot.slane %v503, 2
  %v505 = vmax.f32 %v503, %v504
  %v506 = vrot.slane %v505, 1
  %v507 = vmax.f32 %v505, %v506
  %v508 = vrot.slane %v442, 4
  %v509 = vmax.f32 %v442, %v508
  %v510 = vrot.slane %v509, 2
  %v511 = vmax.f32 %v509, %v510
  %v512 = vrot.slane %v511, 1
  %v513 = vmax.f32 %v511, %v512
  %v514 = vrot.slane %v444, 4
  %v515 = vmax.f32 %v444, %v514
  %v516 = vrot.slane %v515, 2
  %v517 = vmax.f32 %v515, %v516
  %v518 = vrot.slane %v517, 1
  %v519 = vmax.f32 %v517, %v518
  %v520 = vrot.slane %v446, 4
  %v521 = vmax.f32 %v446, %v520
  %v522 = vrot.slane %v521, 2
  %v523 = vmax.f32 %v521, %v522
  %v524 = vrot.slane %v523, 1
  %v525 = vmax.f32 %v523, %v524
  %v526 = vrot.slane %v448, 4
  %v527 = vmax.f32 %v448, %v526
  %v528 = vrot.slane %v527, 2
  %v529 = vmax.f32 %v527, %v528
  %v530 = vrot.slane %v529, 1
  %v531 = vmax.f32 %v529, %v530
  %v532 = vrot.slane %v452, 4
  %v533 = vmax.f32 %v452, %v532
  %v534 = vrot.slane %v533, 2
  %v535 = vmax.f32 %v533, %v534
  %v536 = vrot.slane %v535, 1
  %v537 = vmax.f32 %v535, %v536
  %v538 = vrot.slane %v454, 4
  %v539 = vmax.f32 %v454, %v538
  %v540 = vrot.slane %v539, 2
  %v541 = vmax.f32 %v539, %v540
  %v542 = vrot.slane %v541, 1
  %v543 = vmax.f32 %v541, %v542
  %v544 = vrot.slane %v456, 4
  %v545 = vmax.f32 %v456, %v544
  %v546 = vrot.slane %v545, 2
  %v547 = vmax.f32 %v545, %v546
  %v548 = vrot.slane %v547, 1
  %v549 = vmax.f32 %v547, %v548
  %v550 = vrot.slane %v458, 4
  %v551 = vmax.f32 %v458, %v550
  %v552 = vrot.slane %v551, 2
  %v553 = vmax.f32 %v551, %v552
  %v554 = vrot.slane %v553, 1
  %v555 = vmax.f32 %v553, %v554
  %v556 = vld [vmem:[%s4] sm:$0x3]
  %v558 = vlaneseq
  %v559 = vshrl.u32 %v558, 7
  %v560 = vsub.s32 0, %v559
  %v561 = vrot.slane %v556, %v560
  %v562 = vlaneseq
  %v563 = vshrl.u32 %v562, 7
  %v564 = vsub.s32 1, %v563
  %v565 = vrot.slane %v556, %v564
  %v568 = vadd.f32 %v465, %v561
  %v569 = vadd.f32 %v471, %v565
  %v570 = vadd.f32 %v477, %v561
  %v571 = vadd.f32 %v483, %v565
  %v572 = vadd.f32 %v489, %v561
  %v573 = vadd.f32 %v495, %v565
  %v574 = vadd.f32 %v501, %v561
  %v575 = vadd.f32 %v507, %v565
  %v576 = vadd.f32 %v513, %v561
  %v577 = vadd.f32 %v519, %v565
  %v578 = vadd.f32 %v525, %v561
  %v579 = vadd.f32 %v531, %v565
  %v580 = vadd.f32 %v537, %v561
  %v581 = vadd.f32 %v543, %v565
  %v582 = vadd.f32 %v549, %v561
  %v583 = vadd.f32 %v555, %v565
  %v600 = vrot.slane %v570, 7
  %vm601 = vcmask 1041409
  %v602 = vsel %vm601, %v600, %v568
  %v603 = vrot.slane %v572, 6
  %vm604 = vcmask 1042434
  %v605 = vsel %vm604, %v603, %v602
  %v606 = vrot.slane %v574, 5
  %vm607 = vcmask 1043459
  %v608 = vsel %vm607, %v606, %v605
  %v609 = vrot.slane %v576, 4
  %vm610 = vcmask 1044484
  %v611 = vsel %vm610, %v609, %v608
  %v612 = vrot.slane %v578, 3
  %vm613 = vcmask 1045509
  %v614 = vsel %vm613, %v612, %v611
  %v615 = vrot.slane %v580, 2
  %vm616 = vcmask 1046534
  %v617 = vsel %vm616, %v615, %v614
  %v618 = vrot.slane %v582, 1
  %vm619 = vcmask 1047559
  %v620 = vsel %vm619, %v618, %v617
  %v621 = vrot.slane %v571, 7
  %v622 = vsel %vm601, %v621, %v569
  %v623 = vrot.slane %v573, 6
  %v624 = vsel %vm604, %v623, %v622
  %v625 = vrot.slane %v575, 5
  %v626 = vsel %vm607, %v625, %v624
  %v627 = vrot.slane %v577, 4
  %v628 = vsel %vm610, %v627, %v626
  %v629 = vrot.slane %v579, 3
  %v630 = vsel %vm613, %v629, %v628
  %v631 = vrot.slane %v581, 2
  %v632 = vsel %vm616, %v631, %v630
  %v633 = vrot.slane %v583, 1
  %v634 = vsel %vm619, %v633, %v632
  %637 = vst [vmem:[%s5] sm:$0xff] %v620
  %638 = vst [vmem:[%s5 + $0x8] sm:$0xff] %v634
  // Predicated region
  $region22: #{example_net_forward.1} parent=0 // pred_check
    _
  $region23: #{example_net_forward.1} parent=0 // pred_check_branch
    %640 = sbr.rel (0) target = $region25
  $region24: #{example_net_forward.1} parent=0 // pred_region
    _
  $region25: #{example_net_forward.1} parent=0 // pred_fallthru
    _
  // Predicated region
  $region26: #{example_net_forward.1} parent=0 // pred_check
    _
  $region27: #{example_net_forward.1} parent=0 // pred_check_branch
    %642 = sbr.rel (0) target = $region29
  $region28: #{example_net_forward.1} parent=0 // pred_region
    _
  $region29: #{example_net_forward.1} parent=0 // pred_fallthru
    _

</llo_original>
